<compile_context>
chip_gen: v7x
topology: tpu7x:2x2x1
jax: 0.10.0
libtpu: 0.0.40
codegen_flags: <defaults>
</compile_context>

<pallas_src>
import jax
import jax.numpy as jnp
from jax.experimental import pallas as pl
from jax.experimental.pallas import tpu as pltpu


def _round_up(x, m):
    return (x + m - 1) // m * m


def _weighted_loss_kernel(pred_ref, targ_ref, w_ref, a0s_ref,
                          wpart_ref, a0part_ref):
    # Squared error in f32 (upcast only in-kernel; inputs may be bf16).
    diff = pred_ref[...].astype(jnp.float32) - targ_ref[...].astype(jnp.float32)
    loss = diff * diff                                        # [TB, HT_pad]

    # Batch-sublane reduce first (XLU), then a single weight multiply per tile
    # (VALU) and a lane reduce.  Weights only vary along the flattened (H,T)
    # lane axis, so reducing the batch first is exact.
    loss_rows = jnp.sum(loss, axis=0, keepdims=True)          # [1, HT_pad]
    wsum = jnp.sum(loss_rows * w_ref[...])                    # scalar
    a0sum = jnp.sum(loss_rows * a0s_ref[...])                 # scalar

    # Per-tile partial sums, broadcast over one full (8,128) vreg so the store
    # is unmasked; the wrapper reads element [0, 0].
    ones = jnp.ones(wpart_ref.shape, dtype=jnp.float32)
    wpart_ref[...] = wsum * ones
    a0part_ref[...] = a0sum * ones


def weighted_loss(pred, targ, weights, action_dim, *,
                  block_rows=None, target_block_bytes=2 * 1024 * 1024):
    """Pallas implementation of WeightedLoss.forward (WeightedL2 flavor).

    pred, targ : [B, H, T] arrays (f32 or bf16; kept native through the DMA)
    weights    : [H, T] array (the registered buffer)
    Returns (weighted_loss_scalar, {'a0_loss': a0_loss_scalar})
    """
    B, H, T = pred.shape
    assert targ.shape == (B, H, T)
    assert weights.shape == (H, T)
    assert 0 < action_dim <= T

    HT = H * T
    HT_pad = _round_up(HT, 128)

    # Lane-dense, row-major reshape (free).
    pred2 = pred.reshape(B, HT)
    targ2 = targ.reshape(B, HT)
    w_row = weights.astype(jnp.float32).reshape(1, HT)

    # a0 scale: 1/weights[0, :A] on the first A flattened lanes, 0 elsewhere.
    lane = jnp.arange(HT)
    in_a0 = lane < action_dim
    a0_row = jnp.where(in_a0, 1.0 / jnp.where(in_a0, w_row[0], 1.0), 0.0)
    a0_row = a0_row.reshape(1, HT).astype(jnp.float32)

    if HT_pad != HT:  # zero-padded lanes contribute 0 to both sums
        lpad = HT_pad - HT
        pred2 = jnp.pad(pred2, ((0, 0), (0, lpad)))
        targ2 = jnp.pad(targ2, ((0, 0), (0, lpad)))
        w_row = jnp.pad(w_row, ((0, 0), (0, lpad)))
        a0_row = jnp.pad(a0_row, ((0, 0), (0, lpad)))

    # Batch tile: ~target_block_bytes per pipelined input buffer.
    itemsize = pred2.dtype.itemsize
    if block_rows is None:
        rows = max(32, (target_block_bytes // max(1, HT_pad * itemsize)) // 32 * 32)
    else:
        rows = block_rows
    if B <= rows:
        tb, b_pad = B, B                    # single full-batch tile
    else:
        tb = rows
        b_pad = _round_up(B, tb)
    if b_pad != B:                          # zero rows contribute 0 to both sums
        pred2 = jnp.pad(pred2, ((0, b_pad - B), (0, 0)))
        targ2 = jnp.pad(targ2, ((0, b_pad - B), (0, 0)))

    g = b_pad // tb

    wparts, a0parts = pl.pallas_call(
        _weighted_loss_kernel,
        out_shape=(
            jax.ShapeDtypeStruct((g, 8, 128), jnp.float32),
            jax.ShapeDtypeStruct((g, 8, 128), jnp.float32),
        ),
        grid_spec=pltpu.PrefetchScalarGridSpec(
            num_scalar_prefetch=0,
            grid=(g,),
            in_specs=[
                pl.BlockSpec((tb, HT_pad), lambda b: (b, 0)),
                pl.BlockSpec((tb, HT_pad), lambda b: (b, 0)),
                pl.BlockSpec((1, HT_pad), lambda b: (0, 0)),   # weights stay resident
                pl.BlockSpec((1, HT_pad), lambda b: (0, 0)),   # a0 scale stays resident
            ],
            out_specs=[
                pl.BlockSpec((1, 8, 128), lambda b: (b, 0, 0)),
                pl.BlockSpec((1, 8, 128), lambda b: (b, 0, 0)),
            ],
        ),
        compiler_params=pltpu.CompilerParams(
            dimension_semantics=("parallel",)),
    )(pred2, targ2, w_row, a0_row)

    # Tiny final combine + means (divide by the true, unpadded element counts).
    wsum = jnp.sum(wparts[:, 0, 0])
    a0sum = jnp.sum(a0parts[:, 0, 0])
    weighted_loss_val = wsum / jnp.float32(B * H * T)
    a0_loss_val = a0sum / jnp.float32(B * action_dim)
    return weighted_loss_val, {"a0_loss": a0_loss_val}


def _reference(pred, targ, weights, action_dim):
    loss = (pred.astype(jnp.float32) - targ.astype(jnp.float32)) ** 2
    w = weights.astype(jnp.float32)
    wl = jnp.mean(loss * w[None, :, :])
    a0 = jnp.mean(loss[:, 0, :action_dim] / w[0, :action_dim])
    return wl, a0


if __name__ == "__main__":
    A = 8

    def make_weights(H, T):
        # Deterministic diffuser-style discount weights (strictly positive).
        discounts = 0.99 ** jnp.arange(H, dtype=jnp.float32)
        return jnp.broadcast_to(discounts[:, None], (H, T)).astype(jnp.float32)

    def check(name, pred, targ, weights, **kw):
        wl, aux = weighted_loss(pred, targ, weights, A, **kw)
        jax.block_until_ready((wl, aux["a0_loss"]))
        wl_ref, a0_ref = _reference(pred, targ, weights, A)
        assert jnp.allclose(wl, wl_ref, rtol=1e-5, atol=1e-5), (name, wl, wl_ref)
        assert jnp.allclose(aux["a0_loss"], a0_ref, rtol=1e-5, atol=1e-5), (
            name, aux["a0_loss"], a0_ref)

    key = jax.random.PRNGKey(0)

    # 1) small f32, single tile (grid=1), HT already lane-aligned (8*32=256)
    H, T = 8, 32
    w = make_weights(H, T)
    k1, k2, key = jax.random.split(key, 3)
    pred = jax.random.normal(k1, (4, H, T), dtype=jnp.float32)
    targ = jax.random.normal(k2, (4, H, T), dtype=jnp.float32)
    check("f32_single_tile", pred, targ, w)

    # 2) f32, forced multi-tile grid with batch padding (B=20, tile=8 -> 3 steps)
    k1, k2, key = jax.random.split(key, 3)
    pred = jax.random.normal(k1, (20, H, T), dtype=jnp.float32)
    targ = jax.random.normal(k2, (20, H, T), dtype=jnp.float32)
    check("f32_multi_tile", pred, targ, w, block_rows=8)

    # 3) bf16 inputs kept native through the pipeline (f32 math in-kernel)
    k1, k2, key = jax.random.split(key, 3)
    pred = jax.random.normal(k1, (16, H, T), dtype=jnp.bfloat16)
    targ = jax.random.normal(k2, (16, H, T), dtype=jnp.bfloat16)
    check("bf16_single_tile", pred, targ, w)

    # 4) lane-padding path: HT = 8*20 = 160 -> padded to 256 lanes
    H2, T2 = 8, 20
    w2 = make_weights(H2, T2)
    k1, k2, key = jax.random.split(key, 3)
    pred = jax.random.normal(k1, (12, H2, T2), dtype=jnp.float32)
    targ = jax.random.normal(k2, (12, H2, T2), dtype=jnp.float32)
    check("f32_lane_padded", pred, targ, w2)

    print("KERNEL_OK")
</pallas_src>

<mosaic_0001>
module attributes {stable_mosaic.version = 11 : i64} {
  func.func @_weighted_loss_kernel(%arg0: i32, %arg1: memref<4x256xf32, #tpu.memory_space<vmem>>, %arg2: memref<4x256xf32, #tpu.memory_space<vmem>>, %arg3: memref<1x256xf32, #tpu.memory_space<vmem>>, %arg4: memref<1x256xf32, #tpu.memory_space<vmem>>, %arg5: memref<1x8x128xf32, #tpu.memory_space<vmem>>, %arg6: memref<1x8x128xf32, #tpu.memory_space<vmem>>) attributes {dimension_semantics = [#tpu.dimension_semantics<parallel>], iteration_bounds = array<i64: 1>, scalar_prefetch = 0 : i64, scratch_operands = 0 : i64, tpu.core_type = #tpu.core_type<tc>, window_params = [{transform_indices = @transform_0, window_bounds = array<i64: 4, 256>}, {transform_indices = @transform_1, window_bounds = array<i64: 4, 256>}, {pipeline_mode = #tpu.pipeline_mode<synchronous>, transform_indices = @transform_2, window_bounds = array<i64: 1, 256>}, {pipeline_mode = #tpu.pipeline_mode<synchronous>, transform_indices = @transform_3, window_bounds = array<i64: 1, 256>}, {transform_indices = @transform_4, window_bounds = array<i64: 1, 8, 128>}, {transform_indices = @transform_5, window_bounds = array<i64: 1, 8, 128>}]} {
    %c0 = arith.constant 0 : index
    %c0_0 = arith.constant 0 : index
    %0 = vector.load %arg1[%c0, %c0_0] : memref<4x256xf32, #tpu.memory_space<vmem>>, vector<4x256xf32>
    %c0_1 = arith.constant 0 : index
    %c0_2 = arith.constant 0 : index
    %1 = vector.load %arg2[%c0_1, %c0_2] : memref<4x256xf32, #tpu.memory_space<vmem>>, vector<4x256xf32>
    %2 = arith.subf %0, %1 : vector<4x256xf32>
    %3 = arith.mulf %2, %2 : vector<4x256xf32>
    %cst = arith.constant dense<0.000000e+00> : vector<256xf32>
    %4 = vector.multi_reduction <add>, %3, %cst [0] : vector<4x256xf32> to vector<256xf32>
    %5 = vector.shape_cast %4 : vector<256xf32> to vector<1x256xf32>
    %c0_3 = arith.constant 0 : index
    %c0_4 = arith.constant 0 : index
    %6 = vector.load %arg3[%c0_3, %c0_4] : memref<1x256xf32, #tpu.memory_space<vmem>>, vector<1x256xf32>
    %7 = arith.mulf %5, %6 : vector<1x256xf32>
    %8 = vector.shape_cast %7 : vector<1x256xf32> to vector<1x1x256xf32>
    %cst_5 = arith.constant dense<0.000000e+00> : vector<1xf32>
    %9 = vector.multi_reduction <add>, %8, %cst_5 [1, 2] : vector<1x1x256xf32> to vector<1xf32>
    %10 = vector.shape_cast %9 : vector<1xf32> to vector<1x1x1xf32>
    %11 = vector.extract %10[0, 0, 0] : f32 from vector<1x1x1xf32>
    %c0_6 = arith.constant 0 : index
    %c0_7 = arith.constant 0 : index
    %12 = vector.load %arg4[%c0_6, %c0_7] : memref<1x256xf32, #tpu.memory_space<vmem>>, vector<1x256xf32>
    %13 = arith.mulf %5, %12 : vector<1x256xf32>
    %14 = vector.shape_cast %13 : vector<1x256xf32> to vector<1x1x256xf32>
    %cst_8 = arith.constant dense<0.000000e+00> : vector<1xf32>
    %15 = vector.multi_reduction <add>, %14, %cst_8 [1, 2] : vector<1x1x256xf32> to vector<1xf32>
    %16 = vector.shape_cast %15 : vector<1xf32> to vector<1x1x1xf32>
    %17 = vector.extract %16[0, 0, 0] : f32 from vector<1x1x1xf32>
    %cst_9 = arith.constant 1.000000e+00 : f32
    %18 = vector.broadcast %cst_9 : f32 to vector<1x8x128xf32>
    %19 = vector.broadcast %11 : f32 to vector<1x8x128xf32>
    %20 = arith.mulf %19, %18 : vector<1x8x128xf32>
    %c0_10 = arith.constant 0 : index
    %c0_11 = arith.constant 0 : index
    %c0_12 = arith.constant 0 : index
    %21 = vector.load %arg5[%c0_10, %c0_11, %c0_12] : memref<1x8x128xf32, #tpu.memory_space<vmem>>, vector<1x8x128xf32>
    tpu.vector_store %arg5[%c0_10, %c0_11, %c0_12], %20 {strides = array<i32>} : memref<1x8x128xf32, #tpu.memory_space<vmem>>, vector<1x8x128xf32>,
    %22 = vector.broadcast %17 : f32 to vector<1x8x128xf32>
    %23 = arith.mulf %22, %18 : vector<1x8x128xf32>
    %c0_13 = arith.constant 0 : index
    %c0_14 = arith.constant 0 : index
    %c0_15 = arith.constant 0 : index
    %24 = vector.load %arg6[%c0_13, %c0_14, %c0_15] : memref<1x8x128xf32, #tpu.memory_space<vmem>>, vector<1x8x128xf32>
    tpu.vector_store %arg6[%c0_13, %c0_14, %c0_15], %23 {strides = array<i32>} : memref<1x8x128xf32, #tpu.memory_space<vmem>>, vector<1x8x128xf32>,
    return
  }
  func.func @transform_0(%arg0: i32) -> (i32, i32) {
    %c0_i32 = arith.constant 0 : i32
    %c0_i32_0 = arith.constant 0 : i32
    return %arg0, %c0_i32 : i32, i32
  }
  func.func @transform_1(%arg0: i32) -> (i32, i32) {
    %c0_i32 = arith.constant 0 : i32
    %c0_i32_0 = arith.constant 0 : i32
    return %arg0, %c0_i32 : i32, i32
  }
  func.func @transform_2(%arg0: i32) -> (i32, i32) {
    %c0_i32 = arith.constant 0 : i32
    %c0_i32_0 = arith.constant 0 : i32
    %c0_i32_1 = arith.constant 0 : i32
    return %c0_i32, %c0_i32_0 : i32, i32
  }
  func.func @transform_3(%arg0: i32) -> (i32, i32) {
    %c0_i32 = arith.constant 0 : i32
    %c0_i32_0 = arith.constant 0 : i32
    %c0_i32_1 = arith.constant 0 : i32
    return %c0_i32, %c0_i32_0 : i32, i32
  }
  func.func @transform_4(%arg0: i32) -> (i32, i32, i32) {
    %c0_i32 = arith.constant 0 : i32
    %c0_i32_0 = arith.constant 0 : i32
    %c0_i32_1 = arith.constant 0 : i32
    return %arg0, %c0_i32, %c0_i32_0 : i32, i32, i32
  }
  func.func @transform_5(%arg0: i32) -> (i32, i32, i32) {
    %c0_i32 = arith.constant 0 : i32
    %c0_i32_0 = arith.constant 0 : i32
    %c0_i32_1 = arith.constant 0 : i32
    return %arg0, %c0_i32, %c0_i32_0 : i32, i32, i32
  }
}

</mosaic_0001>

<llo_original>
// kernel: tpu_custom_call.1
$region0: #{tpu_custom_call.1}
  #allocation0 [shape = 'u32[]', space=smem, size = 0x4, offset = 0x4, fixed_abs, tag = 'smem constant byte address 0x4 - core index']
  #allocation1 [shape = 'u32[144,128]{1,0:T(1,128)}', space=vmem, size = 0x12000, scoped, tag = 'internal scratch']
  %s0 = inlined_call_operand.hbm [shape: f32[4,256], index: 0, kind: input, shape index: {}]
  %s1 = inlined_call_operand.hbm [shape: f32[4,256], index: 1, kind: input, shape index: {}]
  %s2 = inlined_call_operand.vmem [shape: f32[1,256], index: 2, kind: input, shape index: {}]
  %s3 = inlined_call_operand.vmem [shape: f32[1,256], index: 3, kind: input, shape index: {}]
  %s4 = inlined_call_operand.hbm [shape: f32[1,8,128], index: 4, kind: output, shape index: {0}]
  %s5 = inlined_call_operand.hbm [shape: f32[1,8,128], index: 5, kind: output, shape index: {1}]
  %6 = xla_tuple %s4, %s5
  %s7 = sld [smem:[#allocation0]]
  $region42: #{tpu_custom_call.1} parent=0
    _
  %s9 = ssub.s32 1, %s7
  %s10 = scalar_select 0, %s9, %s7
  $region1: #{tpu_custom_call.1} parent=0
    #allocation2 [shape = 'u8[4096]{0}', space=vmem, size = 0x1000, scoped, tag = 'input window, operand 0, single buffered']
    #allocation3 [shape = 's32[1]{0}', space=sflag, size = 0x4, scoped, tag = 'scoped memory for tpu_custom_call.1']
    #allocation4 [shape = 's32[1]{0}', space=sflag, size = 0x4, scoped, tag = 'scoped memory for tpu_custom_call.1']
    #allocation5 [shape = 'u8[4096]{0}', space=vmem, size = 0x1000, scoped, tag = 'input window, operand 1, single buffered']
    #allocation6 [shape = 's32[1]{0}', space=sflag, size = 0x4, scoped, tag = 'scoped memory for tpu_custom_call.1']
    #allocation7 [shape = 'u8[4096]{0}', space=vmem, size = 0x1000, scoped, tag = 'output window, operand 0, single buffered']
    #allocation8 [shape = 'u8[4096]{0}', space=vmem, size = 0x1000, scoped, tag = 'output window, operand 1, single buffered']
    #allocation9 [shape = 's32[1]{0}', space=sflag, size = 0x4, scoped, tag = 'scoped memory for tpu_custom_call.1']
    %11 = vsyncpa [#allocation3], 0
    %12 = vsyncpa [#allocation6], 0
    %13 = vsyncpa [#allocation4], 0
    %14 = vsyncpa [#allocation9], 0
    // Predicated region
    $region2: #{tpu_custom_call.1} parent=1 // pred_check
      _
    $region3: #{tpu_custom_call.1} parent=1 // pred_check_branch
      %16 = sbr.rel (0) target = $region5
    $region4: #{tpu_custom_call.1} parent=1 // pred_region
      %s18 = ssub.s32 128, 128
      %19 = vsyncadd [#allocation3], %s18
      %s21 = sshll.u32 [#allocation2], 4
      %s22 = int_to_ptr.vmem [resolvable:$true] %s21
      %24 = dma.hbm_to_vmem [thread:$0]  %s0, 128, %s22, [#allocation3]
    $region5: #{tpu_custom_call.1} parent=1 // pred_fallthru
      _
    // Predicated region
    $region6: #{tpu_custom_call.1} parent=1 // pred_check
      _
    $region7: #{tpu_custom_call.1} parent=1 // pred_check_branch
      %26 = sbr.rel (0) target = $region9
    $region8: #{tpu_custom_call.1} parent=1 // pred_region
      %s28 = ssub.s32 128, 128
      %29 = vsyncadd [#allocation6], %s28
      %s31 = sshll.u32 [#allocation5], 4
      %s32 = int_to_ptr.vmem [resolvable:$true] %s31
      %34 = dma.hbm_to_vmem [thread:$0]  %s1, 128, %s32, [#allocation6]
    $region9: #{tpu_custom_call.1} parent=1 // pred_fallthru
      _
    // Predicated region
    $region10: #{tpu_custom_call.1} parent=1 // pred_check
      _
    $region11: #{tpu_custom_call.1} parent=1 // pred_check_branch
      %36 = sbr.rel (0) target = $region13
    $region12: #{tpu_custom_call.1} parent=1 // pred_region
      _
    $region13: #{tpu_custom_call.1} parent=1 // pred_fallthru
      _
    // Predicated region
    $region14: #{tpu_custom_call.1} parent=1 // pred_check
      _
    $region15: #{tpu_custom_call.1} parent=1 // pred_check_branch
      %38 = sbr.rel (0) target = $region17
    $region16: #{tpu_custom_call.1} parent=1 // pred_region
      _
    $region17: #{tpu_custom_call.1} parent=1 // pred_fallthru
      _
    // Predicated region
    $region18: #{tpu_custom_call.1} parent=1 // pred_check
      _
    $region19: #{tpu_custom_call.1} parent=1 // pred_check_branch
      %40 = sbr.rel (0) target = $region21
    $region20: #{tpu_custom_call.1} parent=1 // pred_region
      %41 = dma.done [#allocation3], 128
    $region21: #{tpu_custom_call.1} parent=1 // pred_fallthru
      _
    // Predicated region
    $region22: #{tpu_custom_call.1} parent=1 // pred_check
      _
    $region23: #{tpu_custom_call.1} parent=1 // pred_check_branch
      %43 = sbr.rel (0) target = $region25
    $region24: #{tpu_custom_call.1} parent=1 // pred_region
      %44 = dma.done [#allocation6], 128
    $region25: #{tpu_custom_call.1} parent=1 // pred_fallthru
      _
    %v45 = vld [vmem:[#allocation2] sm:$0xff]
    %v46 = vld [vmem:[#allocation5] sm:$0xff]
    %v47 = vsub.f32 %v45, %v46
    %v48 = vmul.f32 %v47, %v47
    %v50 = vcombine.high %v48, %v48
    %vm52 = vcmask 1043456
    %v53 = vsel %vm52, %v48, 0.0
    %v54 = vrot.slane %v53, 4
    %v55 = vadd.f32 %v53, %v54
    %v56 = vrot.slane %v55, 2
    %v57 = vadd.f32 %v55, %v56
    %v58 = vrot.slane %v57, 1
    %v59 = vadd.f32 %v57, %v58
    %v60 = vsel %vm52, %v50, 0.0
    %v61 = vrot.slane %v60, 4
    %v62 = vadd.f32 %v60, %v61
    %v63 = vrot.slane %v62, 2
    %v64 = vadd.f32 %v62, %v63
    %v65 = vrot.slane %v64, 1
    %v66 = vadd.f32 %v64, %v65
    %v67 = vld [vmem:[%s2] sm:$0x3]
    %v69 = vlaneseq
    %v70 = vshrl.u32 %v69, 7
    %v71 = vsub.s32 0, %v70
    %v72 = vrot.slane %v67, %v71
    %v73 = vlaneseq
    %v74 = vshrl.u32 %v73, 7
    %v75 = vsub.s32 1, %v74
    %v76 = vrot.slane %v67, %v75
    %v79 = vmul.f32 %v59, %v72
    %v80 = vmul.f32 %v66, %v76
    %vm81 = vcmask 1040384
    %v82 = vsel %vm81, %v79, 0.0
    %v83 = vsel %vm81, %v80, 0.0
    %v84 = vadd.f32 %v82, %v83
    %85 = vadd.xlane.f32.xlu0 %v84
    %v86 = vpop.xlane.xlu0 %85
    %v87 = vrot.slane %v86, 4
    %v88 = vadd.f32 %v86, %v87
    %v89 = vrot.slane %v88, 2
    %v90 = vadd.f32 %v88, %v89
    %v91 = vrot.slane %v90, 1
    %v92 = vadd.f32 %v90, %v91
    %s93 = vtos %v92
    %v94 = vld [vmem:[%s3] sm:$0x3]
    %v96 = vlaneseq
    %v97 = vshrl.u32 %v96, 7
    %v98 = vsub.s32 0, %v97
    %v99 = vrot.slane %v94, %v98
    %v100 = vlaneseq
    %v101 = vshrl.u32 %v100, 7
    %v102 = vsub.s32 1, %v101
    %v103 = vrot.slane %v94, %v102
    %v106 = vmul.f32 %v59, %v99
    %v107 = vmul.f32 %v66, %v103
    %v108 = vsel %vm81, %v106, 0.0
    %v109 = vsel %vm81, %v107, 0.0
    %v110 = vadd.f32 %v108, %v109
    %111 = vadd.xlane.f32.xlu0 %v110
    %v112 = vpop.xlane.xlu0 %111
    %v113 = vrot.slane %v112, 4
    %v114 = vadd.f32 %v112, %v113
    %v115 = vrot.slane %v114, 2
    %v116 = vadd.f32 %v114, %v115
    %v117 = vrot.slane %v116, 1
    %v118 = vadd.f32 %v116, %v117
    %s119 = vtos %v118
    %v120 = vstv %s93
    %121 = vst [vmem:[#allocation7] sm:$0xff] %v120
    %v122 = vstv %s119
    %123 = vst [vmem:[#allocation8] sm:$0xff] %v122
    // Predicated region
    $region26: #{tpu_custom_call.1} parent=1 // pred_check
      _
    $region27: #{tpu_custom_call.1} parent=1 // pred_check_branch
      %125 = sbr.rel (0) target = $region29
    $region28: #{tpu_custom_call.1} parent=1 // pred_region
      %s127 = ssub.s32 128, 128
      %128 = vsyncadd [#allocation4], %s127
      %s130 = sshll.u32 [#allocation7], 4
      %s131 = int_to_ptr.vmem [resolvable:$true] %s130
      %133 = dma.vmem_to_hbm [thread:$0]  %s131, 128, %s4, [#allocation4]
    $region29: #{tpu_custom_call.1} parent=1 // pred_fallthru
      _
    // Predicated region
    $region30: #{tpu_custom_call.1} parent=1 // pred_check
      _
    $region31: #{tpu_custom_call.1} parent=1 // pred_check_branch
      %135 = sbr.rel (0) target = $region33
    $region32: #{tpu_custom_call.1} parent=1 // pred_region
      %s137 = ssub.s32 128, 128
      %138 = vsyncadd [#allocation9], %s137
      %s140 = sshll.u32 [#allocation8], 4
      %s141 = int_to_ptr.vmem [resolvable:$true] %s140
      %143 = dma.vmem_to_hbm [thread:$0]  %s141, 128, %s5, [#allocation9]
    $region33: #{tpu_custom_call.1} parent=1 // pred_fallthru
      _
    // Predicated region
    $region34: #{tpu_custom_call.1} parent=1 // pred_check
      _
    $region35: #{tpu_custom_call.1} parent=1 // pred_check_branch
      %145 = sbr.rel (0) target = $region37
    $region36: #{tpu_custom_call.1} parent=1 // pred_region
      %146 = dma.done [#allocation4], 128
    $region37: #{tpu_custom_call.1} parent=1 // pred_fallthru
      _
    // Predicated region
    $region38: #{tpu_custom_call.1} parent=1 // pred_check
      _
    $region39: #{tpu_custom_call.1} parent=1 // pred_check_branch
      %148 = sbr.rel (0) target = $region41
    $region40: #{tpu_custom_call.1} parent=1 // pred_region
      %149 = dma.done [#allocation9], 128
    $region41: #{tpu_custom_call.1} parent=1 // pred_fallthru
      _
    %150 = vsyncpa [#allocation3], 1
    %151 = vsyncpa [#allocation6], 1
    %152 = vsyncpa [#allocation4], 1
    %153 = vsyncpa [#allocation9], 1

</llo_original>
